<compile_context>
chip_gen: v7x
topology: tpu7x:2x2x1
jax: 0.10.0
libtpu: 0.0.40
codegen_flags: <defaults>
</compile_context>

<pallas_src>
import functools

import jax
import jax.numpy as jnp
from jax.experimental import pallas as pl
from jax.experimental.pallas import tpu as pltpu

TRIPLET_LOSS_GAMMA = 0.5
POSITIVE_RADIUS = 0.1
BIG = 1.0e12


def _gap_kernel(t_ref, pos_ref, anc_ref, s_ref, out_ref, *, np_, na_, gamma, r2):
    f32 = jnp.float32

    # rigid transform ([R | t], row-major 3x4 flattened) lives in SMEM.
    r00, r01, r02, t0 = t_ref[0], t_ref[1], t_ref[2], t_ref[3]
    r10, r11, r12, t1 = t_ref[4], t_ref[5], t_ref[6], t_ref[7]
    r20, r21, r22, t2 = t_ref[8], t_ref[9], t_ref[10], t_ref[11]

    pos = pos_ref[0]                                  # (Np, 4)  [x y z mask]
    anc = anc_ref[0]                                  # (4, Na)  [x; y; z; mask]

    ax, ay, az, am = anc[0:1, :], anc[1:2, :], anc[2:3, :], anc[3:4, :]
    # apply_transform(anc, T): three lane-dense scalar-FMA rows.
    atx = r00 * ax + r01 * ay + r02 * az + t0         # (1, Na)
    aty = r10 * ax + r11 * ay + r12 * az + t1
    atz = r20 * ax + r21 * ay + r22 * az + t2

    px, py, pz, pm = pos[:, 0:1], pos[:, 1:2], pos[:, 2:3], pos[:, 3:4]
    x2 = px * px + py * py + pz * pz                  # (Np, 1)
    y2 = atx * atx + aty * aty + atz * atz            # (1, Na)

    # xy cross term on the MXU: pos's mask column meets a zero row -> 0.
    anc_t = jnp.concatenate([atx, aty, atz, jnp.zeros_like(atx)], axis=0)  # (4, Na)
    xy = jnp.dot(pos, anc_t, preferred_element_type=f32)                   # (Np, Na)
    # no clamp at 0: tiny negative dists don't change either comparison.
    dists = x2 - 2.0 * xy + y2

    gt_masks = (pm * am) > 0.5
    gt_corr = jnp.logical_and(dists < r2, gt_masks)
    gt_neg = dists > (4.0 * r2)                       # (2r)^2 = 4 r^2
    corr_f = gt_corr.astype(f32)

    ones_na1 = jnp.ones((na_, 1), f32)
    # lane-axis (row) reductions stream the slab as MXU LHS; sublane-axis
    # (column) reductions stay on the VPU/XLU (cheap, keeps MXU weight path free).
    row_cnt = jnp.dot(corr_f, ones_na1, preferred_element_type=f32)        # (Np, 1)
    col_cnt = jnp.sum(corr_f, axis=0, keepdims=True)                       # (1, Na)
    row_has = row_cnt > 0.5
    col_has = col_cnt > 0.5

    # peel the dustbin row/column off the full (Np+1, Na+1) score block here.
    s_main = s_ref[0, 0:np_, 0:na_].astype(f32)       # (Np, Na)
    s_rdust = s_ref[0, 0:np_, na_:].astype(f32)       # (Np, 1) dustbin column
    s_cdust = s_ref[0, np_:, 0:na_].astype(f32)       # (1, Na) dustbin row

    pos_scores = jnp.where(gt_corr, -s_main, 0.0)     # computed once, reused
    neg_main = jnp.where(gt_neg, -s_main, BIG)        # shared by both directions

    # --- row direction (gap_loss) -------------------------------------------
    pos_sum_r = (jnp.dot(pos_scores, ones_na1, preferred_element_type=f32)
                 + jnp.where(row_has, 0.0, -s_rdust))
    pos_cnt_r = row_cnt + jnp.where(row_has, 0.0, 1.0)
    pos_r = pos_sum_r / pos_cnt_r                     # (Np, 1)
    neg_rdust = jnp.where(row_has, -s_rdust, BIG)     # (Np, 1)
    relu_r = jnp.maximum(pos_r - neg_main + gamma, 0.0)                    # (Np, Na)
    gap_r = (jnp.dot(relu_r, ones_na1, preferred_element_type=f32)
             + jnp.maximum(pos_r - neg_rdust + gamma, 0.0))                # (Np, 1)
    loss_r = jnp.log(gap_r + 1.0)
    valid_r = (pos_r != BIG).astype(f32)
    row_loss = jnp.sum(loss_r * valid_r, axis=0, keepdims=True)            # (1, 1)
    row_valid = jnp.sum(valid_r, axis=0, keepdims=True)                    # (1, 1)

    # --- column direction (gap_loss2) ----------------------------------------
    pos_sum_c = (jnp.sum(pos_scores, axis=0, keepdims=True)
                 + jnp.where(col_has, 0.0, -s_cdust))
    pos_cnt_c = col_cnt + jnp.where(col_has, 0.0, 1.0)
    pos_c = pos_sum_c / pos_cnt_c                     # (1, Na)
    neg_cdust = jnp.where(col_has, -s_cdust, BIG)     # (1, Na)
    relu_c = jnp.maximum(pos_c - neg_main + gamma, 0.0)                    # (Np, Na)
    gap_c = (jnp.sum(relu_c, axis=0, keepdims=True)
             + jnp.maximum(pos_c - neg_cdust + gamma, 0.0))                # (1, Na)
    loss_c = jnp.log(gap_c + 1.0)
    valid_c = (pos_c != BIG).astype(f32)
    col_loss = jnp.sum(loss_c * valid_c, axis=1, keepdims=True)            # (1, 1)
    col_valid = jnp.sum(valid_c, axis=1, keepdims=True)                    # (1, 1)

    out_ref[0] = jnp.concatenate(
        [row_loss, row_valid, col_loss, col_valid], axis=1)                # (1, 4)


def gap_loss_pallas(pos_pts, anc_pts, pos_masks, anc_masks, matching_scores,
                    transform, positive_radius=POSITIVE_RADIUS,
                    gamma=TRIPLET_LOSS_GAMMA):
    b, n, m = matching_scores.shape
    np_, na_ = n - 1, m - 1
    f32 = jnp.float32

    # Pack masks into the already lane/sublane-padded point slabs (free space):
    # positions (Np,3)+mask -> (Np,4); anchors coord-major (3,Na)+mask -> (4,Na).
    pos_aug = jnp.concatenate(
        [pos_pts.astype(f32), pos_masks.astype(f32)[:, :, None]], axis=2)
    anc_aug = jnp.concatenate(
        [jnp.swapaxes(anc_pts.astype(f32), 1, 2),
         anc_masks.astype(f32)[:, None, :]], axis=1)
    t12 = jnp.asarray(transform, f32)[:3, :4].reshape(12)   # [R | t] row-major

    kernel = functools.partial(_gap_kernel, np_=np_, na_=na_,
                               gamma=float(gamma),
                               r2=float(positive_radius) ** 2)

    # Explicit VMEM budget: double-buffered inputs + ~8 live (Np,Na) f32
    # intermediates (dists, neg_main, pos_scores, relu_r, relu_c, ...).
    def _rup(x, q):
        return ((x + q - 1) // q) * q
    score_bytes = _rup(n, 8) * _rup(m, 128) * jnp.dtype(matching_scores.dtype).itemsize
    pos_bytes = _rup(np_, 8) * 128 * 4
    anc_bytes = 8 * _rup(na_, 128) * 4
    slab_bytes = _rup(np_, 8) * _rup(na_, 128) * 4
    need = 2 * (score_bytes + pos_bytes + anc_bytes) + 8 * slab_bytes + (1 << 20)
    # TODO(synk): if need > 64 MiB (very large Np*Na) add an inner Na tiling.
    vmem_limit = int(min(max(need, 32 << 20), 64 << 20))

    out = pl.pallas_call(
        kernel,
        out_shape=jax.ShapeDtypeStruct((b, 1, 4), f32),
        grid_spec=pltpu.PrefetchScalarGridSpec(
            num_scalar_prefetch=0,
            grid=(b,),                           # 1 batch element / step, >= 2 steps
            in_specs=[
                pl.BlockSpec(memory_space=pltpu.MemorySpace.SMEM),  # transform
                pl.BlockSpec((1, np_, 4), lambda i: (i, 0, 0)),     # pos pts + mask
                pl.BlockSpec((1, 4, na_), lambda i: (i, 0, 0)),     # anc pts + mask
                pl.BlockSpec((1, n, m), lambda i: (i, 0, 0)),       # full scores
            ],
            out_specs=pl.BlockSpec((1, 1, 4), lambda i: (i, 0, 0)),
        ),
        compiler_params=pltpu.CompilerParams(
            dimension_semantics=("parallel",),
            vmem_limit_bytes=vmem_limit),
    )(t12, pos_aug, anc_aug, matching_scores)

    # glue: torch's boolean-filter + mean == masked mean over all rows / cols.
    gap_loss1 = jnp.sum(out[:, 0, 0]) / jnp.sum(out[:, 0, 1])
    gap_loss2 = jnp.sum(out[:, 0, 2]) / jnp.sum(out[:, 0, 3])
    return 0.5 * (gap_loss1 + gap_loss2)


def gap_loss_ref(pos_pts, anc_pts, pos_masks, anc_masks, scores, transform,
                 r=POSITIVE_RADIUS, gamma=TRIPLET_LOSS_GAMMA):
    """Pure-JAX mirror of the PyTorch forward (for validation)."""
    b, n, m = scores.shape
    R, t = transform[:3, :3], transform[:3, 3]
    anc_t = anc_pts @ R.T + t
    x2 = jnp.sum(pos_pts ** 2, -1, keepdims=True)
    y2 = jnp.sum(anc_t ** 2, -1, keepdims=True)
    xy = jnp.einsum('bik,bjk->bij', pos_pts, anc_t)
    d = jnp.maximum(x2 - 2.0 * xy + jnp.swapaxes(y2, 1, 2), 0.0)
    gt_masks = pos_masks[:, :, None] & anc_masks[:, None, :]
    gt_corr = (d < r ** 2) & gt_masks
    gt_neg = d > (2.0 * r) ** 2
    row_has = gt_corr.sum(2) > 0
    col_has = gt_corr.sum(1) > 0
    pos_mask = jnp.zeros((b, n, m), bool)
    pos_mask = pos_mask.at[:, :-1, :-1].set(gt_corr)
    pos_mask = pos_mask.at[:, :-1, -1].set(~row_has)
    pos_mask = pos_mask.at[:, -1, :-1].set(~col_has)
    neg_mask = jnp.zeros((b, n, m), bool)
    neg_mask = neg_mask.at[:, :-1, :-1].set(gt_neg)
    neg_mask = neg_mask.at[:, :-1, -1].set(row_has)
    neg_mask = neg_mask.at[:, -1, :-1].set(col_has)

    sc_r = scores[:, :-1, :]
    pos_r = jnp.where(pos_mask[:, :-1, :], -sc_r, 0.0).sum(2) / \
        pos_mask[:, :-1, :].sum(2)
    neg_r = jnp.where(neg_mask[:, :-1, :], -sc_r, BIG)
    loss_r = jnp.log(jnp.maximum(pos_r[:, :, None] - neg_r + gamma, 0.0).sum(2) + 1.0)
    valid_r = (pos_r != BIG).astype(jnp.float32)
    gap_loss = jnp.sum(loss_r * valid_r) / jnp.sum(valid_r)

    sc_c = scores[:, :, :-1]
    pos_c = jnp.where(pos_mask[:, :, :-1], -sc_c, 0.0).sum(1) / \
        pos_mask[:, :, :-1].sum(1)
    neg_c = jnp.where(neg_mask[:, :, :-1], -sc_c, BIG)
    loss_c = jnp.log(jnp.maximum(pos_c[:, None, :] - neg_c + gamma, 0.0).sum(1) + 1.0)
    valid_c = (pos_c != BIG).astype(jnp.float32)
    gap_loss2 = jnp.sum(loss_c * valid_c) / jnp.sum(valid_c)
    return 0.5 * (gap_loss + gap_loss2)


if __name__ == "__main__":
    key = jax.random.PRNGKey(0)
    b, Np, Na = 2, 8, 8

    k1, k2, k3, k4, k5 = jax.random.split(key, 5)

    # deterministic rigid transform (rotation about z + translation)
    ang = 0.3
    c, s = jnp.cos(ang), jnp.sin(ang)
    R = jnp.array([[c, -s, 0.0], [s, c, 0.0], [0.0, 0.0, 1.0]], jnp.float32)
    t = jnp.array([0.1, -0.2, 0.05], jnp.float32)
    transform = jnp.eye(4, dtype=jnp.float32)
    transform = transform.at[:3, :3].set(R).at[:3, 3].set(t)

    pos_pts = jax.random.normal(k1, (b, Np, 3), jnp.float32)
    noise = 0.02 * jax.random.normal(k2, (b, Na, 3), jnp.float32)
    # anchors chosen so that apply_transform(anc) ~= pos + noise -> nontrivial
    # positive / negative structure around the 0.1 radius.
    anc_pts = (pos_pts + noise - t) @ R

    pos_masks = jax.random.uniform(k3, (b, Np)) > 0.1
    anc_masks = jax.random.uniform(k4, (b, Na)) > 0.1
    matching_scores = jax.random.normal(k5, (b, Np + 1, Na + 1), jnp.float32)

    loss = gap_loss_pallas(pos_pts, anc_pts, pos_masks, anc_masks,
                           matching_scores, transform)
    loss = jax.block_until_ready(loss)

    loss_ref = gap_loss_ref(pos_pts, anc_pts, pos_masks, anc_masks,
                            matching_scores, transform)
    loss_ref = jax.block_until_ready(loss_ref)

    assert jnp.isfinite(loss), "gap loss nan"
    assert jnp.allclose(loss, loss_ref, atol=1e-4, rtol=1e-4), (loss, loss_ref)
    print("KERNEL_OK")
</pallas_src>

<mosaic_0001>
module attributes {stable_mosaic.version = 11 : i64} {
  func.func @_gap_kernel(%arg0: i32, %arg1: memref<12xf32, #tpu.memory_space<smem>>, %arg2: memref<1x8x4xf32, #tpu.memory_space<vmem>>, %arg3: memref<1x4x8xf32, #tpu.memory_space<vmem>>, %arg4: memref<1x9x9xf32, #tpu.memory_space<vmem>>, %arg5: memref<1x1x4xf32, #tpu.memory_space<vmem>>) attributes {dimension_semantics = [#tpu.dimension_semantics<parallel>], iteration_bounds = array<i64: 2>, scalar_prefetch = 0 : i64, scratch_operands = 0 : i64, tpu.core_type = #tpu.core_type<tc>, window_params = [{transform_indices = @transform_0, window_bounds = array<i64: 12>}, {transform_indices = @transform_1, window_bounds = array<i64: 1, 8, 4>}, {transform_indices = @transform_2, window_bounds = array<i64: 1, 4, 8>}, {transform_indices = @transform_3, window_bounds = array<i64: 1, 9, 9>}, {transform_indices = @transform_4, window_bounds = array<i64: 1, 1, 4>}]} {
    %c0 = arith.constant 0 : index
    %0 = memref.load %arg1[%c0] : memref<12xf32, #tpu.memory_space<smem>>
    %c1 = arith.constant 1 : index
    %1 = memref.load %arg1[%c1] : memref<12xf32, #tpu.memory_space<smem>>
    %c2 = arith.constant 2 : index
    %2 = memref.load %arg1[%c2] : memref<12xf32, #tpu.memory_space<smem>>
    %c3 = arith.constant 3 : index
    %3 = memref.load %arg1[%c3] : memref<12xf32, #tpu.memory_space<smem>>
    %c4 = arith.constant 4 : index
    %4 = memref.load %arg1[%c4] : memref<12xf32, #tpu.memory_space<smem>>
    %c5 = arith.constant 5 : index
    %5 = memref.load %arg1[%c5] : memref<12xf32, #tpu.memory_space<smem>>
    %c6 = arith.constant 6 : index
    %6 = memref.load %arg1[%c6] : memref<12xf32, #tpu.memory_space<smem>>
    %c7 = arith.constant 7 : index
    %7 = memref.load %arg1[%c7] : memref<12xf32, #tpu.memory_space<smem>>
    %c8 = arith.constant 8 : index
    %8 = memref.load %arg1[%c8] : memref<12xf32, #tpu.memory_space<smem>>
    %c9 = arith.constant 9 : index
    %9 = memref.load %arg1[%c9] : memref<12xf32, #tpu.memory_space<smem>>
    %c10 = arith.constant 10 : index
    %10 = memref.load %arg1[%c10] : memref<12xf32, #tpu.memory_space<smem>>
    %c11 = arith.constant 11 : index
    %11 = memref.load %arg1[%c11] : memref<12xf32, #tpu.memory_space<smem>>
    %c0_0 = arith.constant 0 : index
    %c0_1 = arith.constant 0 : index
    %c0_2 = arith.constant 0 : index
    %12 = vector.load %arg2[%c0_0, %c0_1, %c0_2] : memref<1x8x4xf32, #tpu.memory_space<vmem>>, vector<1x8x4xf32>
    %13 = vector.shape_cast %12 : vector<1x8x4xf32> to vector<8x4xf32>
    %c0_3 = arith.constant 0 : index
    %c0_4 = arith.constant 0 : index
    %c0_5 = arith.constant 0 : index
    %14 = vector.load %arg3[%c0_3, %c0_4, %c0_5] : memref<1x4x8xf32, #tpu.memory_space<vmem>>, vector<1x4x8xf32>
    %15 = vector.shape_cast %14 : vector<1x4x8xf32> to vector<4x8xf32>
    %16 = vector.extract_strided_slice %15 {offsets = [0, 0], sizes = [1, 8], strides = [1, 1]} : vector<4x8xf32> to vector<1x8xf32>
    %17 = vector.extract_strided_slice %15 {offsets = [1, 0], sizes = [1, 8], strides = [1, 1]} : vector<4x8xf32> to vector<1x8xf32>
    %18 = vector.extract_strided_slice %15 {offsets = [2, 0], sizes = [1, 8], strides = [1, 1]} : vector<4x8xf32> to vector<1x8xf32>
    %19 = vector.extract_strided_slice %15 {offsets = [3, 0], sizes = [1, 8], strides = [1, 1]} : vector<4x8xf32> to vector<1x8xf32>
    %20 = vector.broadcast %0 : f32 to vector<1x8xf32>
    %21 = arith.mulf %20, %16 : vector<1x8xf32>
    %22 = vector.broadcast %1 : f32 to vector<1x8xf32>
    %23 = arith.mulf %22, %17 : vector<1x8xf32>
    %24 = arith.addf %21, %23 : vector<1x8xf32>
    %25 = vector.broadcast %2 : f32 to vector<1x8xf32>
    %26 = arith.mulf %25, %18 : vector<1x8xf32>
    %27 = arith.addf %24, %26 : vector<1x8xf32>
    %28 = vector.broadcast %3 : f32 to vector<1x8xf32>
    %29 = arith.addf %27, %28 : vector<1x8xf32>
    %30 = vector.broadcast %4 : f32 to vector<1x8xf32>
    %31 = arith.mulf %30, %16 : vector<1x8xf32>
    %32 = vector.broadcast %5 : f32 to vector<1x8xf32>
    %33 = arith.mulf %32, %17 : vector<1x8xf32>
    %34 = arith.addf %31, %33 : vector<1x8xf32>
    %35 = vector.broadcast %6 : f32 to vector<1x8xf32>
    %36 = arith.mulf %35, %18 : vector<1x8xf32>
    %37 = arith.addf %34, %36 : vector<1x8xf32>
    %38 = vector.broadcast %7 : f32 to vector<1x8xf32>
    %39 = arith.addf %37, %38 : vector<1x8xf32>
    %40 = vector.broadcast %8 : f32 to vector<1x8xf32>
    %41 = arith.mulf %40, %16 : vector<1x8xf32>
    %42 = vector.broadcast %9 : f32 to vector<1x8xf32>
    %43 = arith.mulf %42, %17 : vector<1x8xf32>
    %44 = arith.addf %41, %43 : vector<1x8xf32>
    %45 = vector.broadcast %10 : f32 to vector<1x8xf32>
    %46 = arith.mulf %45, %18 : vector<1x8xf32>
    %47 = arith.addf %44, %46 : vector<1x8xf32>
    %48 = vector.broadcast %11 : f32 to vector<1x8xf32>
    %49 = arith.addf %47, %48 : vector<1x8xf32>
    %50 = vector.extract_strided_slice %13 {offsets = [0, 0], sizes = [8, 1], strides = [1, 1]} : vector<8x4xf32> to vector<8x1xf32>
    %51 = vector.extract_strided_slice %13 {offsets = [0, 1], sizes = [8, 1], strides = [1, 1]} : vector<8x4xf32> to vector<8x1xf32>
    %52 = vector.extract_strided_slice %13 {offsets = [0, 2], sizes = [8, 1], strides = [1, 1]} : vector<8x4xf32> to vector<8x1xf32>
    %53 = vector.extract_strided_slice %13 {offsets = [0, 3], sizes = [8, 1], strides = [1, 1]} : vector<8x4xf32> to vector<8x1xf32>
    %54 = arith.mulf %50, %50 : vector<8x1xf32>
    %55 = arith.mulf %51, %51 : vector<8x1xf32>
    %56 = arith.addf %54, %55 : vector<8x1xf32>
    %57 = arith.mulf %52, %52 : vector<8x1xf32>
    %58 = arith.addf %56, %57 : vector<8x1xf32>
    %59 = arith.mulf %29, %29 : vector<1x8xf32>
    %60 = arith.mulf %39, %39 : vector<1x8xf32>
    %61 = arith.addf %59, %60 : vector<1x8xf32>
    %62 = arith.mulf %49, %49 : vector<1x8xf32>
    %63 = arith.addf %61, %62 : vector<1x8xf32>
    %cst = arith.constant 0.000000e+00 : f32
    %64 = vector.broadcast %cst : f32 to vector<1x8xf32>
    %65 = tpu.concatenate %29, %39, %49, %64 in 0 : vector<1x8xf32>, vector<1x8xf32>, vector<1x8xf32>, vector<1x8xf32> -> vector<4x8xf32>
    %cst_6 = arith.constant dense<0.000000e+00> : vector<8x8xf32>
    %66 = tpu.matmul %13, %65, %cst_6 {dimension_numbers = #tpu.dot_dimension_numbers<[1], [0], [0], [1], [0, 0, 1, 1], [], []>} : vector<8x4xf32>, vector<4x8xf32>, vector<8x8xf32> -> vector<8x8xf32>
    %cst_7 = arith.constant 2.000000e+00 : f32
    %67 = vector.broadcast %cst_7 : f32 to vector<8x8xf32>
    %68 = arith.mulf %67, %66 : vector<8x8xf32>
    %69 = vector.broadcast %58 : vector<8x1xf32> to vector<8x8xf32>
    %70 = arith.subf %69, %68 : vector<8x8xf32>
    %71 = vector.broadcast %63 : vector<1x8xf32> to vector<8x8xf32>
    %72 = arith.addf %70, %71 : vector<8x8xf32>
    %73 = vector.broadcast %53 : vector<8x1xf32> to vector<8x8xf32>
    %74 = vector.broadcast %19 : vector<1x8xf32> to vector<8x8xf32>
    %75 = arith.mulf %73, %74 : vector<8x8xf32>
    %cst_8 = arith.constant 5.000000e-01 : f32
    %76 = vector.broadcast %cst_8 : f32 to vector<8x8xf32>
    %77 = arith.cmpf ogt, %75, %76 : vector<8x8xf32>
    %cst_9 = arith.constant 0.00999999977 : f32
    %78 = vector.broadcast %cst_9 : f32 to vector<8x8xf32>
    %79 = arith.cmpf olt, %72, %78 : vector<8x8xf32>
    %80 = arith.andi %79, %77 : vector<8x8xi1>
    %cst_10 = arith.constant 4.000000e-02 : f32
    %81 = vector.broadcast %cst_10 : f32 to vector<8x8xf32>
    %82 = arith.cmpf ogt, %72, %81 : vector<8x8xf32>
    %83 = arith.extui %80 : vector<8x8xi1> to vector<8x8xi32>
    %84 = arith.sitofp %83 : vector<8x8xi32> to vector<8x8xf32>
    %cst_11 = arith.constant 1.000000e+00 : f32
    %85 = vector.broadcast %cst_11 : f32 to vector<8x1xf32>
    %cst_12 = arith.constant dense<0.000000e+00> : vector<8x1xf32>
    %86 = tpu.matmul %84, %85, %cst_12 {dimension_numbers = #tpu.dot_dimension_numbers<[1], [0], [0], [1], [0, 0, 1, 1], [], []>} : vector<8x8xf32>, vector<8x1xf32>, vector<8x1xf32> -> vector<8x1xf32>
    %cst_13 = arith.constant dense<0.000000e+00> : vector<8xf32>
    %87 = vector.multi_reduction <add>, %84, %cst_13 [0] : vector<8x8xf32> to vector<8xf32>
    %88 = vector.shape_cast %87 : vector<8xf32> to vector<1x8xf32>
    %cst_14 = arith.constant 5.000000e-01 : f32
    %89 = vector.broadcast %cst_14 : f32 to vector<8x1xf32>
    %90 = arith.cmpf ogt, %86, %89 : vector<8x1xf32>
    %cst_15 = arith.constant 5.000000e-01 : f32
    %91 = vector.broadcast %cst_15 : f32 to vector<1x8xf32>
    %92 = arith.cmpf ogt, %88, %91 : vector<1x8xf32>
    %c0_16 = arith.constant 0 : index
    %c0_17 = arith.constant 0 : index
    %c0_18 = arith.constant 0 : index
    %93 = vector.load %arg4[%c0_16, %c0_17, %c0_18] : memref<1x9x9xf32, #tpu.memory_space<vmem>>, vector<1x8x8xf32>
    %94 = vector.shape_cast %93 : vector<1x8x8xf32> to vector<8x8xf32>
    %c0_19 = arith.constant 0 : index
    %c0_20 = arith.constant 0 : index
    %c8_21 = arith.constant 8 : index
    %95 = vector.load %arg4[%c0_19, %c0_20, %c8_21] : memref<1x9x9xf32, #tpu.memory_space<vmem>>, vector<1x8x1xf32>
    %96 = vector.shape_cast %95 : vector<1x8x1xf32> to vector<8x1xf32>
    %c0_22 = arith.constant 0 : index
    %c8_23 = arith.constant 8 : index
    %c0_24 = arith.constant 0 : index
    %97 = vector.load %arg4[%c0_22, %c8_23, %c0_24] : memref<1x9x9xf32, #tpu.memory_space<vmem>>, vector<1x1x8xf32>
    %98 = vector.shape_cast %97 : vector<1x1x8xf32> to vector<1x8xf32>
    %cst_25 = arith.constant 0.000000e+00 : f32
    %99 = vector.broadcast %cst_25 : f32 to vector<8x8xf32>
    %100 = arith.subf %99, %94 : vector<8x8xf32>
    %cst_26 = arith.constant 0.000000e+00 : f32
    %101 = vector.broadcast %cst_26 : f32 to vector<8x8xf32>
    %102 = arith.select %80, %100, %101 : vector<8x8xi1>, vector<8x8xf32>
    %cst_27 = arith.constant 0.000000e+00 : f32
    %103 = vector.broadcast %cst_27 : f32 to vector<8x8xf32>
    %104 = arith.subf %103, %94 : vector<8x8xf32>
    %cst_28 = arith.constant 9.99999995E+11 : f32
    %105 = vector.broadcast %cst_28 : f32 to vector<8x8xf32>
    %106 = arith.select %82, %104, %105 : vector<8x8xi1>, vector<8x8xf32>
    %cst_29 = arith.constant dense<0.000000e+00> : vector<8x1xf32>
    %107 = tpu.matmul %102, %85, %cst_29 {dimension_numbers = #tpu.dot_dimension_numbers<[1], [0], [0], [1], [0, 0, 1, 1], [], []>} : vector<8x8xf32>, vector<8x1xf32>, vector<8x1xf32> -> vector<8x1xf32>
    %cst_30 = arith.constant 0.000000e+00 : f32
    %108 = vector.broadcast %cst_30 : f32 to vector<8x1xf32>
    %109 = arith.subf %108, %96 : vector<8x1xf32>
    %cst_31 = arith.constant 0.000000e+00 : f32
    %110 = vector.broadcast %cst_31 : f32 to vector<8x1xf32>
    %111 = arith.select %90, %110, %109 : vector<8x1xi1>, vector<8x1xf32>
    %112 = arith.addf %107, %111 : vector<8x1xf32>
    %cst_32 = arith.constant 0.000000e+00 : f32
    %cst_33 = arith.constant 1.000000e+00 : f32
    %113 = vector.broadcast %cst_32 : f32 to vector<8x1xf32>
    %114 = vector.broadcast %cst_33 : f32 to vector<8x1xf32>
    %115 = arith.select %90, %113, %114 : vector<8x1xi1>, vector<8x1xf32>
    %116 = arith.addf %86, %115 : vector<8x1xf32>
    %117 = arith.divf %112, %116 : vector<8x1xf32>
    %cst_34 = arith.constant 0.000000e+00 : f32
    %118 = vector.broadcast %cst_34 : f32 to vector<8x1xf32>
    %119 = arith.subf %118, %96 : vector<8x1xf32>
    %cst_35 = arith.constant 9.99999995E+11 : f32
    %120 = vector.broadcast %cst_35 : f32 to vector<8x1xf32>
    %121 = arith.select %90, %119, %120 : vector<8x1xi1>, vector<8x1xf32>
    %122 = vector.broadcast %117 : vector<8x1xf32> to vector<8x8xf32>
    %123 = arith.subf %122, %106 : vector<8x8xf32>
    %cst_36 = arith.constant 5.000000e-01 : f32
    %124 = vector.broadcast %cst_36 : f32 to vector<8x8xf32>
    %125 = arith.addf %123, %124 : vector<8x8xf32>
    %cst_37 = arith.constant 0.000000e+00 : f32
    %126 = vector.broadcast %cst_37 : f32 to vector<8x8xf32>
    %127 = arith.maximumf %125, %126 : vector<8x8xf32>
    %cst_38 = arith.constant dense<0.000000e+00> : vector<8x1xf32>
    %128 = tpu.matmul %127, %85, %cst_38 {dimension_numbers = #tpu.dot_dimension_numbers<[1], [0], [0], [1], [0, 0, 1, 1], [], []>} : vector<8x8xf32>, vector<8x1xf32>, vector<8x1xf32> -> vector<8x1xf32>
    %129 = arith.subf %117, %121 : vector<8x1xf32>
    %cst_39 = arith.constant 5.000000e-01 : f32
    %130 = vector.broadcast %cst_39 : f32 to vector<8x1xf32>
    %131 = arith.addf %129, %130 : vector<8x1xf32>
    %cst_40 = arith.constant 0.000000e+00 : f32
    %132 = vector.broadcast %cst_40 : f32 to vector<8x1xf32>
    %133 = arith.maximumf %131, %132 : vector<8x1xf32>
    %134 = arith.addf %128, %133 : vector<8x1xf32>
    %cst_41 = arith.constant 1.000000e+00 : f32
    %135 = vector.broadcast %cst_41 : f32 to vector<8x1xf32>
    %136 = arith.addf %134, %135 : vector<8x1xf32>
    %137 = math.log %136 : vector<8x1xf32>
    %cst_42 = arith.constant 9.99999995E+11 : f32
    %138 = vector.broadcast %cst_42 : f32 to vector<8x1xf32>
    %139 = arith.cmpf one, %117, %138 : vector<8x1xf32>
    %140 = arith.extui %139 : vector<8x1xi1> to vector<8x1xi32>
    %141 = arith.sitofp %140 : vector<8x1xi32> to vector<8x1xf32>
    %142 = arith.mulf %137, %141 : vector<8x1xf32>
    %cst_43 = arith.constant dense<0.000000e+00> : vector<1xf32>
    %143 = vector.multi_reduction <add>, %142, %cst_43 [0] : vector<8x1xf32> to vector<1xf32>
    %144 = vector.shape_cast %143 : vector<1xf32> to vector<1x1xf32>
    %cst_44 = arith.constant dense<0.000000e+00> : vector<1xf32>
    %145 = vector.multi_reduction <add>, %141, %cst_44 [0] : vector<8x1xf32> to vector<1xf32>
    %146 = vector.shape_cast %145 : vector<1xf32> to vector<1x1xf32>
    %cst_45 = arith.constant dense<0.000000e+00> : vector<8xf32>
    %147 = vector.multi_reduction <add>, %102, %cst_45 [0] : vector<8x8xf32> to vector<8xf32>
    %148 = vector.shape_cast %147 : vector<8xf32> to vector<1x8xf32>
    %cst_46 = arith.constant 0.000000e+00 : f32
    %149 = vector.broadcast %cst_46 : f32 to vector<1x8xf32>
    %150 = arith.subf %149, %98 : vector<1x8xf32>
    %cst_47 = arith.constant 0.000000e+00 : f32
    %151 = vector.broadcast %cst_47 : f32 to vector<1x8xf32>
    %152 = arith.select %92, %151, %150 : vector<1x8xi1>, vector<1x8xf32>
    %153 = arith.addf %148, %152 : vector<1x8xf32>
    %cst_48 = arith.constant 0.000000e+00 : f32
    %cst_49 = arith.constant 1.000000e+00 : f32
    %154 = vector.broadcast %cst_48 : f32 to vector<1x8xf32>
    %155 = vector.broadcast %cst_49 : f32 to vector<1x8xf32>
    %156 = arith.select %92, %154, %155 : vector<1x8xi1>, vector<1x8xf32>
    %157 = arith.addf %88, %156 : vector<1x8xf32>
    %158 = arith.divf %153, %157 : vector<1x8xf32>
    %cst_50 = arith.constant 0.000000e+00 : f32
    %159 = vector.broadcast %cst_50 : f32 to vector<1x8xf32>
    %160 = arith.subf %159, %98 : vector<1x8xf32>
    %cst_51 = arith.constant 9.99999995E+11 : f32
    %161 = vector.broadcast %cst_51 : f32 to vector<1x8xf32>
    %162 = arith.select %92, %160, %161 : vector<1x8xi1>, vector<1x8xf32>
    %163 = vector.broadcast %158 : vector<1x8xf32> to vector<8x8xf32>
    %164 = arith.subf %163, %106 : vector<8x8xf32>
    %cst_52 = arith.constant 5.000000e-01 : f32
    %165 = vector.broadcast %cst_52 : f32 to vector<8x8xf32>
    %166 = arith.addf %164, %165 : vector<8x8xf32>
    %cst_53 = arith.constant 0.000000e+00 : f32
    %167 = vector.broadcast %cst_53 : f32 to vector<8x8xf32>
    %168 = arith.maximumf %166, %167 : vector<8x8xf32>
    %cst_54 = arith.constant dense<0.000000e+00> : vector<8xf32>
    %169 = vector.multi_reduction <add>, %168, %cst_54 [0] : vector<8x8xf32> to vector<8xf32>
    %170 = vector.shape_cast %169 : vector<8xf32> to vector<1x8xf32>
    %171 = arith.subf %158, %162 : vector<1x8xf32>
    %cst_55 = arith.constant 5.000000e-01 : f32
    %172 = vector.broadcast %cst_55 : f32 to vector<1x8xf32>
    %173 = arith.addf %171, %172 : vector<1x8xf32>
    %cst_56 = arith.constant 0.000000e+00 : f32
    %174 = vector.broadcast %cst_56 : f32 to vector<1x8xf32>
    %175 = arith.maximumf %173, %174 : vector<1x8xf32>
    %176 = arith.addf %170, %175 : vector<1x8xf32>
    %cst_57 = arith.constant 1.000000e+00 : f32
    %177 = vector.broadcast %cst_57 : f32 to vector<1x8xf32>
    %178 = arith.addf %176, %177 : vector<1x8xf32>
    %179 = math.log %178 : vector<1x8xf32>
    %cst_58 = arith.constant 9.99999995E+11 : f32
    %180 = vector.broadcast %cst_58 : f32 to vector<1x8xf32>
    %181 = arith.cmpf one, %158, %180 : vector<1x8xf32>
    %182 = arith.extui %181 : vector<1x8xi1> to vector<1x8xi32>
    %183 = arith.sitofp %182 : vector<1x8xi32> to vector<1x8xf32>
    %184 = arith.mulf %179, %183 : vector<1x8xf32>
    %cst_59 = arith.constant dense<0.000000e+00> : vector<1xf32>
    %185 = vector.multi_reduction <add>, %184, %cst_59 [1] : vector<1x8xf32> to vector<1xf32>
    %186 = vector.shape_cast %185 : vector<1xf32> to vector<1x1xf32>
    %cst_60 = arith.constant dense<0.000000e+00> : vector<1xf32>
    %187 = vector.multi_reduction <add>, %183, %cst_60 [1] : vector<1x8xf32> to vector<1xf32>
    %188 = vector.shape_cast %187 : vector<1xf32> to vector<1x1xf32>
    %189 = tpu.concatenate %144, %146, %186, %188 in 1 : vector<1x1xf32>, vector<1x1xf32>, vector<1x1xf32>, vector<1x1xf32> -> vector<1x4xf32>
    %c0_61 = arith.constant 0 : index
    %c0_62 = arith.constant 0 : index
    %c0_63 = arith.constant 0 : index
    %190 = vector.load %arg5[%c0_61, %c0_62, %c0_63] : memref<1x1x4xf32, #tpu.memory_space<vmem>>, vector<1x1x4xf32>
    %191 = vector.shape_cast %190 : vector<1x1x4xf32> to vector<1x4xf32>
    %192 = vector.shape_cast %189 : vector<1x4xf32> to vector<1x1x4xf32>
    tpu.vector_store %arg5[%c0_61, %c0_62, %c0_63], %192 {strides = array<i32>} : memref<1x1x4xf32, #tpu.memory_space<vmem>>, vector<1x1x4xf32>,
    return
  }
  func.func @transform_0(%arg0: i32) -> i32 {
    %c0_i32 = arith.constant 0 : i32
    %c0_i32_0 = arith.constant 0 : i32
    return %c0_i32 : i32
  }
  func.func @transform_1(%arg0: i32) -> (i32, i32, i32) {
    %c0_i32 = arith.constant 0 : i32
    %c0_i32_0 = arith.constant 0 : i32
    %c0_i32_1 = arith.constant 0 : i32
    return %arg0, %c0_i32, %c0_i32_0 : i32, i32, i32
  }
  func.func @transform_2(%arg0: i32) -> (i32, i32, i32) {
    %c0_i32 = arith.constant 0 : i32
    %c0_i32_0 = arith.constant 0 : i32
    %c0_i32_1 = arith.constant 0 : i32
    return %arg0, %c0_i32, %c0_i32_0 : i32, i32, i32
  }
  func.func @transform_3(%arg0: i32) -> (i32, i32, i32) {
    %c0_i32 = arith.constant 0 : i32
    %c0_i32_0 = arith.constant 0 : i32
    %c0_i32_1 = arith.constant 0 : i32
    return %arg0, %c0_i32, %c0_i32_0 : i32, i32, i32
  }
  func.func @transform_4(%arg0: i32) -> (i32, i32, i32) {
    %c0_i32 = arith.constant 0 : i32
    %c0_i32_0 = arith.constant 0 : i32
    %c0_i32_1 = arith.constant 0 : i32
    return %arg0, %c0_i32, %c0_i32_0 : i32, i32, i32
  }
}

</mosaic_0001>

<llo_original>
// kernel: tpu_custom_call.1
$region0: #{tpu_custom_call.1}
  #allocation0 [shape = 'u32[]', space=smem, size = 0x4, offset = 0x4, fixed_abs, tag = 'smem constant byte address 0x4 - core index']
  #allocation1 [shape = 'u32[144,128]{1,0:T(1,128)}', space=vmem, size = 0x12000, scoped, tag = 'internal scratch']
  %s0 = inlined_call_operand.vmem [shape: f32[12], index: 0, kind: input, shape index: {}]
  %s1 = inlined_call_operand.vmem [shape: f32[2,8,4], index: 1, kind: input, shape index: {}]
  %s2 = inlined_call_operand.vmem [shape: f32[2,4,8], index: 2, kind: input, shape index: {}]
  %s3 = inlined_call_operand.vmem [shape: f32[2,9,9], index: 3, kind: input, shape index: {}]
  %s4 = inlined_call_operand.hbm [shape: f32[2,1,4], index: 4, kind: output, shape index: {}]
  %s5 = sld [smem:[#allocation0]]
  $region53: #{tpu_custom_call.1} parent=0
    _
  %s7 = ssub.s32 1, %s5
  %s8 = scalar_select 0, %s7, %s5
  $region1: #{tpu_custom_call.1} parent=0
    #allocation2 [shape = 'u8[512]{0}', space=smem, size = 0x200, scoped, tag = 'input window, operand 0, single buffered']
    #allocation3 [shape = 's32[2]{0}', space=sflag, size = 0x8, scoped, tag = 'scoped memory for tpu_custom_call.1']
    #allocation4 [shape = 's32[2]{0}', space=sflag, size = 0x8, scoped, tag = 'scoped memory for tpu_custom_call.1']
    #allocation5 [shape = 'u8[1024]{0}', space=vmem, size = 0x400, scoped, tag = 'output window, operand 0']
    %9 = vsyncpa [#allocation4], 0
    %10 = vsyncpa [#allocation3], 0
    %s11 = scalar_lea.sflag [#allocation3], 1
    %12 = vsyncpa %s11, 0
    loop: start=0, step=1, limit=4
    $region2: #{tpu_custom_call.1} parent=1 // loop_pre_header
      _
    $region3: #{tpu_custom_call.1} parent=1 // loop_header
      %s14 = sphi 0, %s18
      %p15 = scmp.ge.s32.totalorder %s14, 4
      %s22 = sphi 0, %s22
      %s24 = sphi 0, %s22
      %s25 = sphi 0, %s24
      %s39 = sphi 0, %s25
      %s45 = sphi 0, %s47
      %s48 = sphi 0, %s45
      %s49 = sphi 0, %s48
      %s65 = sphi 0, %s49
      %s71 = sphi 0, %s73
      %s74 = sphi 0, %s71
      %s75 = sphi 0, %s74
      %s91 = sphi 0, %s75
      %s97 = sphi 0, %s99
      %s100 = sphi 0, %s97
      %s101 = sphi 0, %s100
      %s117 = sphi 0, %s101
      %s123 = sphi 0, %s125
      %s126 = sphi 0, %s123
      %s127 = sphi 0, %s126
      %s143 = sphi 0, %s127
    $region4: #{tpu_custom_call.1} parent=1 // loop_header_branch
      %17 = sbr.rel (%p15) target = $region8
    $region5: #{tpu_custom_call.1} parent=1 // loop_body
      %s19 = ssub.s32 %s14, 1
      %s20 = ssub.s32 %s14, 2
      %s21 = sadd.s32 %s14, 1
      %s23 = sadd.s32 %s22, 1
      %p26 = scmp.eq.s32.totalorder %s14, 1
      %p27 = scmp.ne.s32.totalorder %s22, %s24
      %p28 = scmp.eq.s32.totalorder %s14, 0
      %p29 = por %p27, %p28
      %p30 = scmp.ne.s32.totalorder %s22, %s24
      %p31 = scmp.eq.s32.totalorder %s19, 1
      %p32 = por %p30, %p31
      %p33 = scmp.ne.s32.totalorder %s24, %s25
      %p34 = scmp.eq.s32.totalorder %s19, 0
      %p35 = por %p33, %p34
      %p36 = scmp.ne.s32.totalorder %s24, %s25
      %p37 = scmp.eq.s32.totalorder %s20, 1
      %p38 = por %p36, %p37
      %p40 = scmp.ne.s32.totalorder %s25, %s39
      %p41 = scmp.eq.s32.totalorder %s20, 0
      %p42 = por %p40, %p41
      %s43 = ssub.s32 %s14, %s21
      %p44 = scmp.eq.s32.totalorder %s43, 0
      %s46 = sadd.s32 %s45, 1
      %s47 = scalar_select %p44, %s45, %s46
      %p50 = pneg %p44
      %p51 = scmp.eq.s32.totalorder %s14, 1
      %p52 = por %p50, %p51
      %p53 = scmp.ne.s32.totalorder %s45, %s48
      %p54 = scmp.eq.s32.totalorder %s14, 0
      %p55 = por %p53, %p54
      %p56 = scmp.ne.s32.totalorder %s45, %s48
      %p57 = scmp.eq.s32.totalorder %s19, 1
      %p58 = por %p56, %p57
      %p59 = scmp.ne.s32.totalorder %s48, %s49
      %p60 = scmp.eq.s32.totalorder %s19, 0
      %p61 = por %p59, %p60
      %p62 = scmp.ne.s32.totalorder %s48, %s49
      %p63 = scmp.eq.s32.totalorder %s20, 1
      %p64 = por %p62, %p63
      %p66 = scmp.ne.s32.totalorder %s49, %s65
      %p67 = scmp.eq.s32.totalorder %s20, 0
      %p68 = por %p66, %p67
      %s69 = ssub.s32 %s14, %s21
      %p70 = scmp.eq.s32.totalorder %s69, 0
      %s72 = sadd.s32 %s71, 1
      %s73 = scalar_select %p70, %s71, %s72
      %p76 = pneg %p70
      %p77 = scmp.eq.s32.totalorder %s14, 1
      %p78 = por %p76, %p77
      %p79 = scmp.ne.s32.totalorder %s71, %s74
      %p80 = scmp.eq.s32.totalorder %s14, 0
      %p81 = por %p79, %p80
      %p82 = scmp.ne.s32.totalorder %s71, %s74
      %p83 = scmp.eq.s32.totalorder %s19, 1
      %p84 = por %p82, %p83
      %p85 = scmp.ne.s32.totalorder %s74, %s75
      %p86 = scmp.eq.s32.totalorder %s19, 0
      %p87 = por %p85, %p86
      %p88 = scmp.ne.s32.totalorder %s74, %s75
      %p89 = scmp.eq.s32.totalorder %s20, 1
      %p90 = por %p88, %p89
      %p92 = scmp.ne.s32.totalorder %s75, %s91
      %p93 = scmp.eq.s32.totalorder %s20, 0
      %p94 = por %p92, %p93
      %s95 = ssub.s32 %s14, %s21
      %p96 = scmp.eq.s32.totalorder %s95, 0
      %s98 = sadd.s32 %s97, 1
      %s99 = scalar_select %p96, %s97, %s98
      %p102 = pneg %p96
      %p103 = scmp.eq.s32.totalorder %s14, 1
      %p104 = por %p102, %p103
      %p105 = scmp.ne.s32.totalorder %s97, %s100
      %p106 = scmp.eq.s32.totalorder %s14, 0
      %p107 = por %p105, %p106
      %p108 = scmp.ne.s32.totalorder %s97, %s100
      %p109 = scmp.eq.s32.totalorder %s19, 1
      %p110 = por %p108, %p109
      %p111 = scmp.ne.s32.totalorder %s100, %s101
      %p112 = scmp.eq.s32.totalorder %s19, 0
      %p113 = por %p111, %p112
      %p114 = scmp.ne.s32.totalorder %s100, %s101
      %p115 = scmp.eq.s32.totalorder %s20, 1
      %p116 = por %p114, %p115
      %p118 = scmp.ne.s32.totalorder %s101, %s117
      %p119 = scmp.eq.s32.totalorder %s20, 0
      %p120 = por %p118, %p119
      %s121 = ssub.s32 %s14, %s21
      %p122 = scmp.eq.s32.totalorder %s121, 0
      %s124 = sadd.s32 %s123, 1
      %s125 = scalar_select %p122, %s123, %s124
      %p128 = pneg %p122
      %p129 = scmp.eq.s32.totalorder %s14, 1
      %p130 = por %p128, %p129
      %p131 = scmp.ne.s32.totalorder %s123, %s126
      %p132 = scmp.eq.s32.totalorder %s14, 0
      %p133 = por %p131, %p132
      %p134 = scmp.ne.s32.totalorder %s123, %s126
      %p135 = scmp.eq.s32.totalorder %s19, 1
      %p136 = por %p134, %p135
      %p137 = scmp.ne.s32.totalorder %s126, %s127
      %p138 = scmp.eq.s32.totalorder %s19, 0
      %p139 = por %p137, %p138
      %p140 = scmp.ne.s32.totalorder %s126, %s127
      %p141 = scmp.eq.s32.totalorder %s20, 1
      %p142 = por %p140, %p141
      %p144 = scmp.ne.s32.totalorder %s127, %s143
      %p145 = scmp.eq.s32.totalorder %s20, 0
      %p146 = por %p144, %p145
      %p147 = scmp.le.s32.totalorder 1, %s14
      %p148 = scmp.lt.s32.totalorder %s14, 3
      %p149 = pnand %p147, %p148
      %p150 = pneg %p149
      // Predicated region
      $region9: #{tpu_custom_call.1} parent=5 // pred_check
        _
      $region10: #{tpu_custom_call.1} parent=5 // pred_check_branch
        %152 = sbr.rel (%p149) target = $region12
      $region11: #{tpu_custom_call.1} parent=5 // pred_region
        %s153 = ssub.s32 %s14, 1
        // Predicated region
        $region13: #{tpu_custom_call.1} parent=11 // pred_check
          %p154 = pneg %p35
        $region14: #{tpu_custom_call.1} parent=11 // pred_check_branch
          %156 = sbr.rel (%p154) target = $region16
        $region15: #{tpu_custom_call.1} parent=11 // pred_region
          %s158 = ssub.s32 16, 16
          %159 = vsyncadd [#allocation4], %s158
          %s161 = sshll.u32 %s0, 4
          %s162 = int_to_ptr.vmem [resolvable:$true] %s161
          %164 = dma.vmem_to_smem %s162, 16, [#allocation2], [#allocation4]
        $region16: #{tpu_custom_call.1} parent=11 // pred_fallthru
          _
      $region12: #{tpu_custom_call.1} parent=5 // pred_fallthru
        _
      %p165 = scmp.lt.s32.totalorder %s14, 2
      // Predicated region
      $region17: #{tpu_custom_call.1} parent=5 // pred_check
        %p166 = pneg %p165
      $region18: #{tpu_custom_call.1} parent=5 // pred_check_branch
        %168 = sbr.rel (%p166) target = $region20
      $region19: #{tpu_custom_call.1} parent=5 // pred_region
        // Predicated region
        $region21: #{tpu_custom_call.1} parent=19 // pred_check
          %p169 = pneg %p55
        $region22: #{tpu_custom_call.1} parent=19 // pred_check_branch
          %171 = sbr.rel (%p169) target = $region24
        $region23: #{tpu_custom_call.1} parent=19 // pred_region
          %p172 = scmp.lt.s32.totalorder %s14, 1
          %s173 = scalar_select %p172, %s14, 1
          %s174 = smul.addr %s173, 8
          %s175 = scalar_lea.vmem %s1, %s174
        $region24: #{tpu_custom_call.1} parent=19 // pred_fallthru
          _
        // Predicated region
        $region25: #{tpu_custom_call.1} parent=19 // pred_check
          %p176 = pneg %p81
        $region26: #{tpu_custom_call.1} parent=19 // pred_check_branch
          %178 = sbr.rel (%p176) target = $region28
        $region27: #{tpu_custom_call.1} parent=19 // pred_region
          %p179 = scmp.lt.s32.totalorder %s14, 1
          %s180 = scalar_select %p179, %s14, 1
          %s181 = smul.addr %s180, 4
          %s182 = scalar_lea.vmem %s2, %s181
        $region28: #{tpu_custom_call.1} parent=19 // pred_fallthru
          _
        // Predicated region
        $region29: #{tpu_custom_call.1} parent=19 // pred_check
          %p183 = pneg %p107
        $region30: #{tpu_custom_call.1} parent=19 // pred_check_branch
          %185 = sbr.rel (%p183) target = $region32
        $region31: #{tpu_custom_call.1} parent=19 // pred_region
          %p186 = scmp.lt.s32.totalorder %s14, 1
          %s187 = scalar_select %p186, %s14, 1
          %s188 = smul.addr %s187, 2
          %s189 = smul.addr %s188, 8
          %s190 = scalar_lea.vmem %s3, %s189
        $region32: #{tpu_custom_call.1} parent=19 // pred_fallthru
          _
      $region20: #{tpu_custom_call.1} parent=5 // pred_fallthru
        _
      %p191 = scmp.le.s32.totalorder 1, %s14
      %p192 = scmp.lt.s32.totalorder %s14, 3
      %p193 = pnand %p191, %p192
      %p194 = pneg %p193
      // Predicated region
      $region33: #{tpu_custom_call.1} parent=5 // pred_check
        _
      $region34: #{tpu_custom_call.1} parent=5 // pred_check_branch
        %196 = sbr.rel (%p193) target = $region36
      $region35: #{tpu_custom_call.1} parent=5 // pred_region
        %s197 = ssub.s32 %s14, 1
        // Predicated region
        $region37: #{tpu_custom_call.1} parent=35 // pred_check
          %p198 = pneg %p35
        $region38: #{tpu_custom_call.1} parent=35 // pred_check_branch
          %200 = sbr.rel (%p198) target = $region40
        $region39: #{tpu_custom_call.1} parent=35 // pred_region
          %201 = dma.done [#allocation4], 16
        $region40: #{tpu_custom_call.1} parent=35 // pred_fallthru
          _
        %202 = sfence
        %p203 = pneg %p35
        %p204 = pneg %p32
        %p205 = scmp.lt.s32.totalorder %s19, 1
        %s206 = scalar_select %p205, %s19, 1
        %s207 = smul.addr %s206, 8
        %s208 = scalar_lea.vmem %s1, %s207
        %p209 = pneg %p61
        %p210 = pneg %p58
        %p211 = scmp.lt.s32.totalorder %s19, 1
        %s212 = scalar_select %p211, %s19, 1
        %s213 = smul.addr %s212, 4
        %s214 = scalar_lea.vmem %s2, %s213
        %p215 = pneg %p87
        %p216 = pneg %p84
        %p217 = scmp.lt.s32.totalorder %s19, 1
        %s218 = scalar_select %p217, %s19, 1
        %s219 = smul.addr %s218, 2
        %s220 = smul.addr %s219, 8
        %s221 = scalar_lea.vmem %s3, %s220
        %p222 = pneg %p113
        %p223 = pneg %p110
        %p224 = pneg %p139
        %p225 = pneg %p136
        %s226 = sand.u32 %s126, 1
        %s227 = scalar_lea.sflag [#allocation3], %s226
        %s228 = sand.u32 %s126, 1
        %s229 = scalar_lea.vmem [#allocation5], %s228
        %p230 = scmp.lt.s32.totalorder %s19, 1
        %s231 = scalar_select %p230, %s19, 1
        %s232 = smul.addr %s231, 8
        %s233 = scalar_lea.vmem %s1, %s232
        %p234 = scmp.lt.s32.totalorder %s19, 1
        %s235 = scalar_select %p234, %s19, 1
        %s236 = smul.addr %s235, 4
        %s237 = scalar_lea.vmem %s2, %s236
        %p238 = scmp.lt.s32.totalorder %s19, 1
        %s239 = scalar_select %p238, %s19, 1
        %s240 = smul.addr %s239, 2
        %s241 = smul.addr %s240, 8
        %s242 = scalar_lea.vmem %s3, %s241
        %s243 = sld [smem:[#allocation2]]
        %s244 = sld [smem:[#allocation2 + $0x1]]
        %s245 = sld [smem:[#allocation2 + $0x2]]
        %s246 = sld [smem:[#allocation2 + $0x3]]
        %s247 = sld [smem:[#allocation2 + $0x4]]
        %s248 = sld [smem:[#allocation2 + $0x5]]
        %s249 = sld [smem:[#allocation2 + $0x6]]
        %s250 = sld [smem:[#allocation2 + $0x7]]
        %s251 = sld [smem:[#allocation2 + $0x8]]
        %s252 = sld [smem:[#allocation2 + $0x9]]
        %s253 = sld [smem:[#allocation2 + $0xa]]
        %s254 = sld [smem:[#allocation2 + $0xb]]
        %v255 = vld [vmem:[%s233] sm:$0xff]
        %v256 = vld [vmem:[%s237] sm:$0xf]
        %v257 = vstv %s243
        %v258 = vmul.f32 %v257, %v256
        %v259 = vstv %s244
        %v260 = vmul.f32 %v259, %v256
        %v262 = vrot.slane %v260, 1
        %v264 = vadd.f32 %v258, %v262
        %v265 = vstv %s245
        %v266 = vmul.f32 %v265, %v256
        %v268 = vrot.slane %v266, 2
        %v270 = vadd.f32 %v264, %v268
        %v271 = vstv %s246
        %v272 = vadd.f32 %v270, %v271
        %v273 = vstv %s247
        %v274 = vmul.f32 %v273, %v256
        %v275 = vstv %s248
        %v276 = vmul.f32 %v275, %v256
        %v278 = vrot.slane %v276, 1
        %v280 = vadd.f32 %v274, %v278
        %v281 = vstv %s249
        %v282 = vmul.f32 %v281, %v256
        %v284 = vrot.slane %v282, 2
        %v286 = vadd.f32 %v280, %v284
        %v287 = vstv %s250
        %v288 = vadd.f32 %v286, %v287
        %v289 = vstv %s251
        %v290 = vmul.f32 %v289, %v256
        %v291 = vstv %s252
        %v292 = vmul.f32 %v291, %v256
        %v294 = vrot.slane %v292, 1
        %v296 = vadd.f32 %v290, %v294
        %v297 = vstv %s253
        %v298 = vmul.f32 %v297, %v256
        %v300 = vrot.slane %v298, 2
        %v302 = vadd.f32 %v296, %v300
        %v303 = vstv %s254
        %v304 = vadd.f32 %v302, %v303
        %v305 = vmul.f32 %v255, %v255
        %307 = vrot.lane.b32.xlu0 %v305, 127
        %v308 = vpop.permute.xlu0 %307
        %v310 = vadd.f32 %v305, %v308
        %311 = vrot.lane.b32.xlu0 %v305, 126
        %v312 = vpop.permute.xlu0 %311
        %v314 = vadd.f32 %v310, %v312
        %v315 = vmul.f32 %v272, %v272
        %v316 = vmul.f32 %v288, %v288
        %v317 = vadd.f32 %v315, %v316
        %v318 = vmul.f32 %v304, %v304
        %v319 = vadd.f32 %v317, %v318
        %v321 = vrot.slane %v288, 7
        %v324 = vrot.slane %v304, 6
        %vm326 = vcmask 1040384
        %v327 = vsel %vm326, %v272, %v321
        %vm328 = vcmask 1041408
        %v329 = vsel %vm328, %v327, %v324
        %vm330 = vcmask 1042432
        %v331 = vsel %vm330, %v329, 0.0
        %vm332 = vcmask 31744
        %v334 = vsel %vm332, %v255, 0
        %vm336 = vcmask 1043456
        %v338 = vsel %vm336, %v331, 0
        %340 = vmatprep.subr.mxu0 0.0
        %341 = vmatpush1.msra.mxu0 %v338
        %342 = vmatprep.subr.mxu0 0.0
        %343 = vmatpush1.msra.mxu0 0.0
        %344 = vmatprep.subr.mxu0 0.0
        %345 = vmatpush1.msra.mxu0 0.0
        %346 = vmatprep.subr.mxu0 0.0
        %347 = vmatpush1.msra.mxu0 0.0
        %348 = vmatprep.subr.mxu0 0.0
        %349 = vmatpush1.msra.mxu0 0.0
        %350 = vmatprep.subr.mxu0 0.0
        %351 = vmatpush1.msra.mxu0 0.0
        %352 = vmatprep.subr.mxu0 0.0
        %353 = vmatpush1.msra.mxu0 0.0
        %354 = vmatprep.subr.mxu0 0.0
        %355 = vmatpush1.msra.mxu0 0.0
        %356 = vmatprep.subr.mxu0 0.0
        %357 = vmatpush1.msra.mxu0 0.0
        %358 = vmatprep.subr.mxu0 0.0
        %359 = vmatpush1.msra.mxu0 0.0
        %360 = vmatprep.subr.mxu0 0.0
        %361 = vmatpush1.msra.mxu0 0.0
        %362 = vmatprep.subr.mxu0 0.0
        %363 = vmatpush1.msra.mxu0 0.0
        %364 = vmatprep.subr.mxu0 0.0
        %365 = vmatpush1.msra.mxu0 0.0
        %366 = vmatprep.subr.mxu0 0.0
        %367 = vmatpush1.msra.mxu0 0.0
        %368 = vmatprep.subr.mxu0 0.0
        %369 = vmatpush1.msra.mxu0 0.0
        %370 = vmatprep.subr.mxu0 0.0
        %371 = vmatpush1.msra.mxu0 0.0
        %372 = vmatprep.subr.mxu0 0.0
        %373 = vmatpush1.msra.mxu0 0.0
        %374 = vmatprep.subr.mxu0 0.0
        %375 = vmatpush1.msra.mxu0 0.0
        %376 = vmatprep.subr.mxu0 0.0
        %377 = vmatpush1.msra.mxu0 0.0
        %378 = vmatprep.subr.mxu0 0.0
        %379 = vmatpush1.msra.mxu0 0.0
        %380 = vmatprep.subr.mxu0 0.0
        %381 = vmatpush1.msra.mxu0 0.0
        %382 = vmatprep.subr.mxu0 0.0
        %383 = vmatpush1.msra.mxu0 0.0
        %384 = vmatprep.subr.mxu0 0.0
        %385 = vmatpush1.msra.mxu0 0.0
        %386 = vmatprep.subr.mxu0 0.0
        %387 = vmatpush1.msra.mxu0 0.0
        %388 = vmatprep.subr.mxu0 0.0
        %389 = vmatpush1.msra.mxu0 0.0
        %390 = vmatprep.subr.mxu0 0.0
        %391 = vmatpush1.msra.mxu0 0.0
        %392 = vmatprep.subr.mxu0 0.0
        %393 = vmatpush1.msra.mxu0 0.0
        %394 = vmatprep.subr.mxu0 0.0
        %395 = vmatpush1.msra.mxu0 0.0
        %396 = vmatprep.subr.mxu0 0.0
        %397 = vmatpush1.msra.mxu0 0.0
        %398 = vmatprep.subr.mxu0 0.0
        %399 = vmatpush1.msra.mxu0 0.0
        %400 = vmatprep.subr.mxu0 0.0
        %401 = vmatpush1.msra.mxu0 0.0
        %402 = vmatprep.subr.mxu0 0.0
        %403 = vmatpush1.msra.mxu0 0.0
        %404 = vmatprep.mubr.f32.mxu0 0.0
        %405 = vmatmul.mubr.f32.gmra.mrb[0].mxu0 %v334
        %v406 = vpop.f32.mrb[0].mxu0
        %v407 = vadd.f32 0.0, %v406
        %v408 = vpop.f32.mrb[0].mxu0
        %409 = vdwg.mxu0
        %v410 = vmul.f32 %v407, 2.0
        %412 = vset.pattern.permute.xlu0 0
        %413 = vperm.xlu0 %412, %v314
        %v414 = vpop.permute.xlu0 %413
        %v416 = vsub.f32 %v414, %v410
        %v417 = vlaneseq
        %v418 = vshrl.u32 %v417, 7
        %v419 = vsub.s32 0, %v418
        %v420 = vrot.slane %v319, %v419
        %v421 = vadd.f32 %v416, %v420
        %422 = vset.pattern.permute.xlu0 3
        %423 = vperm.xlu0 %422, %v255
        %v424 = vpop.permute.xlu0 %423
        %v426 = vlaneseq
        %v427 = vshrl.u32 %v426, 7
        %v428 = vsub.s32 3, %v427
        %v429 = vrot.slane %v256, %v428
        %v430 = vmul.f32 %v424, %v429
        %vm431 = vcmp.gt.f32.partialorder %v430, 0.5
        %vm432 = vcmp.lt.f32.partialorder %v421, 0.01
        %vm433 = vmand %vm432, %vm431
        %vm434 = vcmp.gt.f32.partialorder %v421, 0.04
        %v435 = vsel %vm433, 1, 0
        %v436 = vcvt.s32.f32 %v435
        %vm437 = vcmask 64512
        %v439 = vsel %vm437, %v436, 0
        %441 = vmatprep.subr.mxu0 0.0
        %442 = vmatpush1.msra.mxu0 1.0
        %443 = vmatprep.subr.mxu0 0.0
        %444 = vmatpush1.msra.mxu0 0.0
        %445 = vmatprep.subr.mxu0 0.0
        %446 = vmatpush1.msra.mxu0 0.0
        %447 = vmatprep.subr.mxu0 0.0
        %448 = vmatpush1.msra.mxu0 0.0
        %449 = vmatprep.subr.mxu0 0.0
        %450 = vmatpush1.msra.mxu0 0.0
        %451 = vmatprep.subr.mxu0 0.0
        %452 = vmatpush1.msra.mxu0 0.0
        %453 = vmatprep.subr.mxu0 0.0
        %454 = vmatpush1.msra.mxu0 0.0
        %455 = vmatprep.subr.mxu0 0.0
        %456 = vmatpush1.msra.mxu0 0.0
        %457 = vmatprep.subr.mxu0 0.0
        %458 = vmatpush1.msra.mxu0 0.0
        %459 = vmatprep.subr.mxu0 0.0
        %460 = vmatpush1.msra.mxu0 0.0
        %461 = vmatprep.subr.mxu0 0.0
        %462 = vmatpush1.msra.mxu0 0.0
        %463 = vmatprep.subr.mxu0 0.0
        %464 = vmatpush1.msra.mxu0 0.0
        %465 = vmatprep.subr.mxu0 0.0
        %466 = vmatpush1.msra.mxu0 0.0
        %467 = vmatprep.subr.mxu0 0.0
        %468 = vmatpush1.msra.mxu0 0.0
        %469 = vmatprep.subr.mxu0 0.0
        %470 = vmatpush1.msra.mxu0 0.0
        %471 = vmatprep.subr.mxu0 0.0
        %472 = vmatpush1.msra.mxu0 0.0
        %473 = vmatprep.subr.mxu0 0.0
        %474 = vmatpush1.msra.mxu0 0.0
        %475 = vmatprep.subr.mxu0 0.0
        %476 = vmatpush1.msra.mxu0 0.0
        %477 = vmatprep.subr.mxu0 0.0
        %478 = vmatpush1.msra.mxu0 0.0
        %479 = vmatprep.subr.mxu0 0.0
        %480 = vmatpush1.msra.mxu0 0.0
        %481 = vmatprep.subr.mxu0 0.0
        %482 = vmatpush1.msra.mxu0 0.0
        %483 = vmatprep.subr.mxu0 0.0
        %484 = vmatpush1.msra.mxu0 0.0
        %485 = vmatprep.subr.mxu0 0.0
        %486 = vmatpush1.msra.mxu0 0.0
        %487 = vmatprep.subr.mxu0 0.0
        %488 = vmatpush1.msra.mxu0 0.0
        %489 = vmatprep.subr.mxu0 0.0
        %490 = vmatpush1.msra.mxu0 0.0
        %491 = vmatprep.subr.mxu0 0.0
        %492 = vmatpush1.msra.mxu0 0.0
        %493 = vmatprep.subr.mxu0 0.0
        %494 = vmatpush1.msra.mxu0 0.0
        %495 = vmatprep.subr.mxu0 0.0
        %496 = vmatpush1.msra.mxu0 0.0
        %497 = vmatprep.subr.mxu0 0.0
        %498 = vmatpush1.msra.mxu0 0.0
        %499 = vmatprep.subr.mxu0 0.0
        %500 = vmatpush1.msra.mxu0 0.0
        %501 = vmatprep.subr.mxu0 0.0
        %502 = vmatpush1.msra.mxu0 0.0
        %503 = vmatprep.subr.mxu0 0.0
        %504 = vmatpush1.msra.mxu0 0.0
        %505 = vmatprep.mubr.f32.mxu0 0.0
        %506 = vmatmul.mubr.f32.gmra.mrb[0].mxu0 %v439
        %v507 = vpop.f32.mrb[0].mxu0
        %v508 = vadd.f32 0.0, %v507
        %v509 = vpop.f32.mrb[0].mxu0
        %510 = vdwg.mxu0
        %v511 = vsel %vm437, %v436, 0.0
        %v512 = vrot.slane %v511, 4
        %v513 = vadd.f32 %v511, %v512
        %v514 = vrot.slane %v513, 2
        %v515 = vadd.f32 %v513, %v514
        %v516 = vrot.slane %v515, 1
        %v517 = vadd.f32 %v515, %v516
        %vm518 = vcmp.gt.f32.partialorder %v508, 0.5
        %vm519 = vcmp.gt.f32.partialorder %v517, 0.5
        %v520 = vld [vmem:[%s242] sm:$0xff]
        %v521 = vld [vmem:[%s242 + $0x8] sm:$0x1]
        %v522 = vsub.f32 0.0, %v520
        %v523 = vsel %vm433, %v522, 0.0
        %v524 = vsel %vm434, %v522, 1e+12
        %526 = vrot.lane.b32.xlu0 %v522, 120
        %v527 = vpop.permute.xlu0 %526
        %v529 = vsel %vm518, 0.0, %v527
        %v531 = vsel %vm437, %v523, 0
        %533 = vmatprep.subr.mxu0 0.0
        %534 = vmatpush1.msra.mxu0 1.0
        %535 = vmatprep.subr.mxu0 0.0
        %536 = vmatpush1.msra.mxu0 0.0
        %537 = vmatprep.subr.mxu0 0.0
        %538 = vmatpush1.msra.mxu0 0.0
        %539 = vmatprep.subr.mxu0 0.0
        %540 = vmatpush1.msra.mxu0 0.0
        %541 = vmatprep.subr.mxu0 0.0
        %542 = vmatpush1.msra.mxu0 0.0
        %543 = vmatprep.subr.mxu0 0.0
        %544 = vmatpush1.msra.mxu0 0.0
        %545 = vmatprep.subr.mxu0 0.0
        %546 = vmatpush1.msra.mxu0 0.0
        %547 = vmatprep.subr.mxu0 0.0
        %548 = vmatpush1.msra.mxu0 0.0
        %549 = vmatprep.subr.mxu0 0.0
        %550 = vmatpush1.msra.mxu0 0.0
        %551 = vmatprep.subr.mxu0 0.0
        %552 = vmatpush1.msra.mxu0 0.0
        %553 = vmatprep.subr.mxu0 0.0
        %554 = vmatpush1.msra.mxu0 0.0
        %555 = vmatprep.subr.mxu0 0.0
        %556 = vmatpush1.msra.mxu0 0.0
        %557 = vmatprep.subr.mxu0 0.0
        %558 = vmatpush1.msra.mxu0 0.0
        %559 = vmatprep.subr.mxu0 0.0
        %560 = vmatpush1.msra.mxu0 0.0
        %561 = vmatprep.subr.mxu0 0.0
        %562 = vmatpush1.msra.mxu0 0.0
        %563 = vmatprep.subr.mxu0 0.0
        %564 = vmatpush1.msra.mxu0 0.0
        %565 = vmatprep.subr.mxu0 0.0
        %566 = vmatpush1.msra.mxu0 0.0
        %567 = vmatprep.subr.mxu0 0.0
        %568 = vmatpush1.msra.mxu0 0.0
        %569 = vmatprep.subr.mxu0 0.0
        %570 = vmatpush1.msra.mxu0 0.0
        %571 = vmatprep.subr.mxu0 0.0
        %572 = vmatpush1.msra.mxu0 0.0
        %573 = vmatprep.subr.mxu0 0.0
        %574 = vmatpush1.msra.mxu0 0.0
        %575 = vmatprep.subr.mxu0 0.0
        %576 = vmatpush1.msra.mxu0 0.0
        %577 = vmatprep.subr.mxu0 0.0
        %578 = vmatpush1.msra.mxu0 0.0
        %579 = vmatprep.subr.mxu0 0.0
        %580 = vmatpush1.msra.mxu0 0.0
        %581 = vmatprep.subr.mxu0 0.0
        %582 = vmatpush1.msra.mxu0 0.0
        %583 = vmatprep.subr.mxu0 0.0
        %584 = vmatpush1.msra.mxu0 0.0
        %585 = vmatprep.subr.mxu0 0.0
        %586 = vmatpush1.msra.mxu0 0.0
        %587 = vmatprep.subr.mxu0 0.0
        %588 = vmatpush1.msra.mxu0 0.0
        %589 = vmatprep.subr.mxu0 0.0
        %590 = vmatpush1.msra.mxu0 0.0
        %591 = vmatprep.subr.mxu0 0.0
        %592 = vmatpush1.msra.mxu0 0.0
        %593 = vmatprep.subr.mxu0 0.0
        %594 = vmatpush1.msra.mxu0 0.0
        %595 = vmatprep.subr.mxu0 0.0
        %596 = vmatpush1.msra.mxu0 0.0
        %597 = vmatprep.mubr.f32.mxu0 0.0
        %598 = vmatmul.mubr.f32.gmra.mrb[0].mxu0 %v531
        %v599 = vpop.f32.mrb[0].mxu0
        %v600 = vadd.f32 %v529, %v599
        %v601 = vpop.f32.mrb[0].mxu0
        %602 = vdwg.mxu0
        %v603 = vsel %vm518, 0.0, 1.0
        %v604 = vadd.f32 %v508, %v603
        %v605 = vrcp.pop %v604
        %v606 = vmul.f32 %v600, %v605
        %v607 = vsel %vm518, %v527, 1e+12
        %609 = vset.pattern.permute.xlu0 0
        %610 = vperm.xlu0 %609, %v606
        %v611 = vpop.permute.xlu0 %610
        %v613 = vsub.f32 %v611, %v524
        %v614 = vadd.f32 %v613, 0.5
        %v615 = vmax.f32 %v614, 0.0
        %v616 = vsub.f32 %v606, %v607
        %v617 = vadd.f32 %v616, 0.5
        %v618 = vmax.f32 %v617, 0.0
        %v620 = vsel %vm437, %v615, 0
        %622 = vmatprep.subr.mxu0 0.0
        %623 = vmatpush1.msra.mxu0 1.0
        %624 = vmatprep.subr.mxu0 0.0
        %625 = vmatpush1.msra.mxu0 0.0
        %626 = vmatprep.subr.mxu0 0.0
        %627 = vmatpush1.msra.mxu0 0.0
        %628 = vmatprep.subr.mxu0 0.0
        %629 = vmatpush1.msra.mxu0 0.0
        %630 = vmatprep.subr.mxu0 0.0
        %631 = vmatpush1.msra.mxu0 0.0
        %632 = vmatprep.subr.mxu0 0.0
        %633 = vmatpush1.msra.mxu0 0.0
        %634 = vmatprep.subr.mxu0 0.0
        %635 = vmatpush1.msra.mxu0 0.0
        %636 = vmatprep.subr.mxu0 0.0
        %637 = vmatpush1.msra.mxu0 0.0
        %638 = vmatprep.subr.mxu0 0.0
        %639 = vmatpush1.msra.mxu0 0.0
        %640 = vmatprep.subr.mxu0 0.0
        %641 = vmatpush1.msra.mxu0 0.0
        %642 = vmatprep.subr.mxu0 0.0
        %643 = vmatpush1.msra.mxu0 0.0
        %644 = vmatprep.subr.mxu0 0.0
        %645 = vmatpush1.msra.mxu0 0.0
        %646 = vmatprep.subr.mxu0 0.0
        %647 = vmatpush1.msra.mxu0 0.0
        %648 = vmatprep.subr.mxu0 0.0
        %649 = vmatpush1.msra.mxu0 0.0
        %650 = vmatprep.subr.mxu0 0.0
        %651 = vmatpush1.msra.mxu0 0.0
        %652 = vmatprep.subr.mxu0 0.0
        %653 = vmatpush1.msra.mxu0 0.0
        %654 = vmatprep.subr.mxu0 0.0
        %655 = vmatpush1.msra.mxu0 0.0
        %656 = vmatprep.subr.mxu0 0.0
        %657 = vmatpush1.msra.mxu0 0.0
        %658 = vmatprep.subr.mxu0 0.0
        %659 = vmatpush1.msra.mxu0 0.0
        %660 = vmatprep.subr.mxu0 0.0
        %661 = vmatpush1.msra.mxu0 0.0
        %662 = vmatprep.subr.mxu0 0.0
        %663 = vmatpush1.msra.mxu0 0.0
        %664 = vmatprep.subr.mxu0 0.0
        %665 = vmatpush1.msra.mxu0 0.0
        %666 = vmatprep.subr.mxu0 0.0
        %667 = vmatpush1.msra.mxu0 0.0
        %668 = vmatprep.subr.mxu0 0.0
        %669 = vmatpush1.msra.mxu0 0.0
        %670 = vmatprep.subr.mxu0 0.0
        %671 = vmatpush1.msra.mxu0 0.0
        %672 = vmatprep.subr.mxu0 0.0
        %673 = vmatpush1.msra.mxu0 0.0
        %674 = vmatprep.subr.mxu0 0.0
        %675 = vmatpush1.msra.mxu0 0.0
        %676 = vmatprep.subr.mxu0 0.0
        %677 = vmatpush1.msra.mxu0 0.0
        %678 = vmatprep.subr.mxu0 0.0
        %679 = vmatpush1.msra.mxu0 0.0
        %680 = vmatprep.subr.mxu0 0.0
        %681 = vmatpush1.msra.mxu0 0.0
        %682 = vmatprep.subr.mxu0 0.0
        %683 = vmatpush1.msra.mxu0 0.0
        %684 = vmatprep.subr.mxu0 0.0
        %685 = vmatpush1.msra.mxu0 0.0
        %686 = vmatprep.mubr.f32.mxu0 0.0
        %687 = vmatmul.mubr.f32.gmra.mrb[0].mxu0 %v620
        %v688 = vpop.f32.mrb[0].mxu0
        %v689 = vadd.f32 %v618, %v688
        %v690 = vpop.f32.mrb[0].mxu0
        %691 = vdwg.mxu0
        %v692 = vadd.f32 %v689, 1.0
        %v693 = vlog2.pop %v692
        %v694 = vmul.f32 %v693, 0.6931472
        %vm695 = vcmp.ne.f32.partialorder %v606, 1e+12
        %v696 = vsel %vm695, 1, 0
        %v697 = vcvt.s32.f32 %v696
        %v698 = vmul.f32 %v694, %v697
        %vm699 = vcmask 7168
        %v700 = vsel %vm699, %v698, 0.0
        %v701 = vrot.slane %v700, 4
        %v702 = vadd.f32 %v700, %v701
        %v703 = vrot.slane %v702, 2
        %v704 = vadd.f32 %v702, %v703
        %v705 = vrot.slane %v704, 1
        %v706 = vadd.f32 %v704, %v705
        %v707 = vsel %vm699, %v697, 0.0
        %v708 = vrot.slane %v707, 4
        %v709 = vadd.f32 %v707, %v708
        %v710 = vrot.slane %v709, 2
        %v711 = vadd.f32 %v709, %v710
        %v712 = vrot.slane %v711, 1
        %v713 = vadd.f32 %v711, %v712
        %v714 = vsel %vm437, %v523, 0.0
        %v715 = vrot.slane %v714, 4
        %v716 = vadd.f32 %v714, %v715
        %v717 = vrot.slane %v716, 2
        %v718 = vadd.f32 %v716, %v717
        %v719 = vrot.slane %v718, 1
        %v720 = vadd.f32 %v718, %v719
        %v721 = vsub.f32 0.0, %v521
        %v722 = vsel %vm519, 0.0, %v721
        %v723 = vadd.f32 %v720, %v722
        %v724 = vsel %vm519, 0.0, 1.0
        %v725 = vadd.f32 %v517, %v724
        %v726 = vrcp.pop %v725
        %v727 = vmul.f32 %v723, %v726
        %v728 = vsel %vm519, %v721, 1e+12
        %v729 = vlaneseq
        %v730 = vshrl.u32 %v729, 7
        %v731 = vsub.s32 0, %v730
        %v732 = vrot.slane %v727, %v731
        %v733 = vsub.f32 %v732, %v524
        %v734 = vadd.f32 %v733, 0.5
        %v735 = vmax.f32 %v734, 0.0
        %v736 = vsel %vm437, %v735, 0.0
        %v737 = vrot.slane %v736, 4
        %v738 = vadd.f32 %v736, %v737
        %v739 = vrot.slane %v738, 2
        %v740 = vadd.f32 %v738, %v739
        %v741 = vrot.slane %v740, 1
        %v742 = vadd.f32 %v740, %v741
        %v743 = vsub.f32 %v727, %v728
        %v744 = vadd.f32 %v743, 0.5
        %v745 = vmax.f32 %v744, 0.0
        %v746 = vadd.f32 %v742, %v745
        %v747 = vadd.f32 %v746, 1.0
        %v748 = vlog2.pop %v747
        %v749 = vmul.f32 %v748, 0.6931472
        %vm750 = vcmp.ne.f32.partialorder %v727, 1e+12
        %v751 = vsel %vm750, 1, 0
        %v752 = vcvt.s32.f32 %v751
        %v753 = vmul.f32 %v749, %v752
        %vm754 = vcmask 57344
        %v755 = vsel %vm754, %v753, 0.0
        %756 = vadd.xlane.f32.xlu0 %v755
        %v757 = vpop.xlane.xlu0 %756
        %v758 = vsel %vm754, %v752, 0.0
        %759 = vadd.xlane.f32.xlu0 %v758
        %v760 = vpop.xlane.xlu0 %759
        %762 = vrot.lane.b32.xlu0 %v713, 1
        %v763 = vpop.permute.xlu0 %762
        %v765 = vsel %vm699, %v706, %v763
        %vm766 = vcmask 15360
        %v767 = vsel %vm766, %v765, %v757
        %vm768 = vcmask 23552
        %v769 = vsel %vm768, %v767, %v760
        %vm770 = vcmask 24576
        %771 = vst.msk [vmem:[%s229] sm:$0x1] %vm770, %v769
        %s772 = sand.u32 %s126, 1
        %s773 = scalar_lea.sflag [#allocation3], %s772
        %s774 = sand.u32 %s126, 1
        %s775 = scalar_lea.vmem [#allocation5], %s774
        // Predicated region
        $region41: #{tpu_custom_call.1} parent=35 // pred_check
          %p776 = pneg %p136
        $region42: #{tpu_custom_call.1} parent=35 // pred_check_branch
          %778 = sbr.rel (%p776) target = $region44
        $region43: #{tpu_custom_call.1} parent=35 // pred_region
          %s780 = ssub.s32 16, 16
          %781 = vsyncadd %s773, %s780
          %s782 = smul.addr %s19, 16
          %s783 = scalar_lea.hbm %s4, %s782
          %s785 = sshll.u32 %s775, 4
          %s786 = int_to_ptr.vmem [resolvable:$true] %s785
          %788 = dma.vmem_to_hbm [thread:$0]  %s786, 16, %s783, %s773
        $region44: #{tpu_custom_call.1} parent=35 // pred_fallthru
          _
      $region36: #{tpu_custom_call.1} parent=5 // pred_fallthru
        _
      %p789 = scmp.le.s32.totalorder 2, %s14
      // Predicated region
      $region45: #{tpu_custom_call.1} parent=5 // pred_check
        %p790 = pneg %p789
      $region46: #{tpu_custom_call.1} parent=5 // pred_check_branch
        %792 = sbr.rel (%p790) target = $region48
      $region47: #{tpu_custom_call.1} parent=5 // pred_region
        %s793 = ssub.s32 %s14, 2
        // Predicated region
        $region49: #{tpu_custom_call.1} parent=47 // pred_check
          %p794 = pneg %p142
        $region50: #{tpu_custom_call.1} parent=47 // pred_check_branch
          %796 = sbr.rel (%p794) target = $region52
        $region51: #{tpu_custom_call.1} parent=47 // pred_region
          %s797 = sand.u32 %s127, 1
          %s798 = scalar_lea.sflag [#allocation3], %s797
          %s799 = sand.u32 %s127, 1
          %s800 = scalar_lea.vmem [#allocation5], %s799
          %801 = dma.done %s798, 16
        $region52: #{tpu_custom_call.1} parent=47 // pred_fallthru
          _
      $region48: #{tpu_custom_call.1} parent=5 // pred_fallthru
        _
    $region6: #{tpu_custom_call.1} parent=1 // loop_footer
      %s18 = sadd.s32 1, %s14
    $region7: #{tpu_custom_call.1} parent=1 // loop_footer_branch
      %13 = sbr.rel target = $region3
    $region8: #{tpu_custom_call.1} parent=1 // loop_exit
      _
    %802 = vsyncpa [#allocation3], 1
    %s803 = scalar_lea.sflag [#allocation3], 1
    %804 = vsyncpa %s803, 1
    %805 = vsyncpa [#allocation4], 1
    %s806 = scalar_lea.sflag [#allocation4], 1
    %807 = vsyncpa %s806, 1

</llo_original>
